<compile_context>
chip_gen: v5e
topology: v5e:2x2
jax: 0.10.0
libtpu: 0.0.40
codegen_flags: <defaults>
</compile_context>

<pallas_src>
import functools

import jax
import jax.numpy as jnp
from jax.experimental import pallas as pl
from jax.experimental.pallas import tpu as pltpu

LOG_STD_MAX = 2.0
LOG_STD_MIN = -5.0

_LANE = 128
_SUBLANE = 8


def _round_up(x: int, m: int) -> int:
    return ((x + m - 1) // m) * m


def _sac_player_kernel(
    obs_ref,    # (TB, D_pad)        VMEM  compute dtype
    w1_ref,     # (D_pad, H_pad)     VMEM  compute dtype
    b1_ref,     # (1, H_pad)         VMEM  f32
    w2_ref,     # (H_pad, H_pad)     VMEM  compute dtype
    b2_ref,     # (1, H_pad)         VMEM  f32
    wh_ref,     # (H_pad, 2*A_pad)   VMEM  compute dtype  (fused mean|logstd)
    bh_ref,     # (1, 2*A_pad)       VMEM  f32
    eps_ref,    # (TB, A_pad)        VMEM  f32 (zeros => greedy)
    scale_ref,  # (1, 1)             SMEM  action_scale
    bias_ref,   # (1, 1)             SMEM  action_bias
    act_ref,    # (TB, A_pad)        VMEM  f32 output (lane-dense)
    *,
    a_pad: int,
):
    x = obs_ref[...]

    # Feature extractor: 2-layer ReLU MLP.  MXU matmuls accumulate in f32.
    h1 = jnp.dot(x, w1_ref[...], preferred_element_type=jnp.float32) + b1_ref[...]
    h1 = jnp.maximum(h1, 0.0).astype(w2_ref.dtype)
    h2 = jnp.dot(h1, w2_ref[...], preferred_element_type=jnp.float32) + b2_ref[...]
    h2 = jnp.maximum(h2, 0.0).astype(wh_ref.dtype)

    # Fused heads: one (TB, 2*A_pad) matmul, then 128-aligned slices.
    head = jnp.dot(h2, wh_ref[...], preferred_element_type=jnp.float32) + bh_ref[...]
    mean = head[:, :a_pad]
    log_std = head[:, a_pad:]

    # clamp -> exp -> reparameterized sample -> tanh squash -> rescale (VPU/EUP).
    std = jnp.exp(jnp.clip(log_std, LOG_STD_MIN, LOG_STD_MAX))
    x_t = mean + std * eps_ref[...]
    y_t = jnp.tanh(x_t)
    act_ref[...] = (y_t * scale_ref[0, 0] + bias_ref[0, 0]).astype(act_ref.dtype)


def prepare_params(params, compute_dtype=jnp.float32):
    """Pad dims to MXU-friendly sizes and fuse the two head layers host-side.

    Returns a dict of arrays only (safe to pass through jit)."""
    w1, b1 = params["w1"], params["b1"]
    w2, b2 = params["w2"], params["b2"]
    wm, bm = params["wm"], params["bm"]
    ws, bs = params["ws"], params["bs"]

    D, H = w1.shape
    A = wm.shape[1]
    D_pad = _round_up(D, _LANE)
    H_pad = _round_up(H, _LANE)
    A_pad = _round_up(A, _LANE)

    def pad2(x, r, c):
        return jnp.pad(x, ((0, r - x.shape[0]), (0, c - x.shape[1])))

    return {
        "w1": pad2(w1, D_pad, H_pad).astype(compute_dtype),
        "b1": pad2(b1, 1, H_pad).astype(jnp.float32),
        "w2": pad2(w2, H_pad, H_pad).astype(compute_dtype),
        "b2": pad2(b2, 1, H_pad).astype(jnp.float32),
        # Fused head weight: [ fc_mean | fc_logstd ], each padded to A_pad lanes.
        "wh": jnp.concatenate(
            [pad2(wm, H_pad, A_pad), pad2(ws, H_pad, A_pad)], axis=1
        ).astype(compute_dtype),
        "bh": jnp.concatenate(
            [pad2(bm, 1, A_pad), pad2(bs, 1, A_pad)], axis=1
        ).astype(jnp.float32),
    }


@functools.partial(jax.jit, static_argnames=("act_dim", "block_b", "compute_dtype"))
def sac_player_forward(
    obs,
    packed,
    eps,
    action_scale,
    action_bias,
    *,
    act_dim: int,
    block_b: int = 128,
    compute_dtype=jnp.float32,
):
    """SACPlayer forward. Stochastic if eps != 0, greedy if eps == 0."""
    B, D = obs.shape
    D_pad, H_pad = packed["w1"].shape
    A_pad = packed["wh"].shape[1] // 2

    # Batch tile: multiple of 8 sublanes; pad the batch up to a whole tile count.
    tb = min(block_b, _round_up(B, _SUBLANE))
    B_pad = _round_up(B, tb)
    n_tiles = B_pad // tb

    obs_p = jnp.pad(obs, ((0, B_pad - B), (0, D_pad - D))).astype(compute_dtype)
    eps_p = jnp.pad(eps, ((0, B_pad - B), (0, A_pad - act_dim))).astype(jnp.float32)

    vmem = pltpu.MemorySpace.VMEM
    smem = pltpu.MemorySpace.SMEM

    out = pl.pallas_call(
        functools.partial(_sac_player_kernel, a_pad=A_pad),
        out_shape=jax.ShapeDtypeStruct((B_pad, A_pad), jnp.float32),
        grid=(n_tiles,),
        in_specs=[
            pl.BlockSpec((tb, D_pad), lambda i: (i, 0), memory_space=vmem),       # obs
            pl.BlockSpec((D_pad, H_pad), lambda i: (0, 0), memory_space=vmem),    # w1 (resident)
            pl.BlockSpec((1, H_pad), lambda i: (0, 0), memory_space=vmem),        # b1
            pl.BlockSpec((H_pad, H_pad), lambda i: (0, 0), memory_space=vmem),    # w2
            pl.BlockSpec((1, H_pad), lambda i: (0, 0), memory_space=vmem),        # b2
            pl.BlockSpec((H_pad, 2 * A_pad), lambda i: (0, 0), memory_space=vmem),# wh fused
            pl.BlockSpec((1, 2 * A_pad), lambda i: (0, 0), memory_space=vmem),    # bh fused
            pl.BlockSpec((tb, A_pad), lambda i: (i, 0), memory_space=vmem),       # eps
            pl.BlockSpec(memory_space=smem),                                      # action_scale
            pl.BlockSpec(memory_space=smem),                                      # action_bias
        ],
        out_specs=pl.BlockSpec((tb, A_pad), lambda i: (i, 0), memory_space=vmem),
        compiler_params=pltpu.CompilerParams(
            dimension_semantics=("parallel",),  # v7x dual-TC sharding; no-op elsewhere
        ),
    )(
        obs_p,
        packed["w1"], packed["b1"],
        packed["w2"], packed["b2"],
        packed["wh"], packed["bh"],
        eps_p,
        action_scale.reshape(1, 1).astype(jnp.float32),
        action_bias.reshape(1, 1).astype(jnp.float32),
    )

    # Drop batch padding and the padded (zero-weight) action lanes.
    return out[:B, :act_dim]


def init_params(key, obs_dim, hidden_dim, act_dim):
    """Deterministic synthetic parameters (shapes match sheeprl's SAC actor)."""
    ks = jax.random.split(key, 8)
    s = 0.1
    return {
        "w1": s * jax.random.normal(ks[0], (obs_dim, hidden_dim), jnp.float32),
        "b1": s * jax.random.normal(ks[1], (1, hidden_dim), jnp.float32),
        "w2": s * jax.random.normal(ks[2], (hidden_dim, hidden_dim), jnp.float32),
        "b2": s * jax.random.normal(ks[3], (1, hidden_dim), jnp.float32),
        "wm": s * jax.random.normal(ks[4], (hidden_dim, act_dim), jnp.float32),
        "bm": s * jax.random.normal(ks[5], (1, act_dim), jnp.float32),
        "ws": s * jax.random.normal(ks[6], (hidden_dim, act_dim), jnp.float32),
        "bs": s * jax.random.normal(ks[7], (1, act_dim), jnp.float32),
    }


def reference_forward(obs, params, eps, action_scale, action_bias):
    """Pure-JAX reference mirroring the PyTorch forward."""
    h1 = jnp.maximum(obs @ params["w1"] + params["b1"], 0.0)
    h2 = jnp.maximum(h1 @ params["w2"] + params["b2"], 0.0)
    mean = h2 @ params["wm"] + params["bm"]
    log_std = h2 @ params["ws"] + params["bs"]
    std = jnp.exp(jnp.clip(log_std, LOG_STD_MIN, LOG_STD_MAX))
    x_t = mean + std * eps
    return jnp.tanh(x_t) * action_scale + action_bias


if __name__ == "__main__":
    key = jax.random.PRNGKey(0)
    k_params, k_obs, k_eps = jax.random.split(key, 3)

    batch, obs_dim, hidden, act_dim = 8, 16, 32, 4
    action_low, action_high = -1.0, 1.0
    action_scale = jnp.asarray((action_high - action_low) / 2.0, jnp.float32)
    action_bias = jnp.asarray((action_high + action_low) / 2.0, jnp.float32)

    params = init_params(k_params, obs_dim, hidden, act_dim)
    obs = jax.random.normal(k_obs, (batch, obs_dim), jnp.float32)
    # Reparameterization noise (Normal.rsample); zeros reproduce the greedy path.
    eps = jax.random.normal(k_eps, (batch, act_dim), jnp.float32)

    ref = reference_forward(obs, params, eps, action_scale, action_bias)
    ref_greedy = reference_forward(
        obs, params, jnp.zeros_like(eps), action_scale, action_bias
    )

    # --- f32 operands: tight tolerance ---------------------------------------
    packed_f32 = prepare_params(params, compute_dtype=jnp.float32)
    actions = sac_player_forward(
        obs, packed_f32, eps, action_scale, action_bias, act_dim=act_dim
    )
    actions = jax.block_until_ready(actions)
    greedy = sac_player_forward(
        obs, packed_f32, jnp.zeros_like(eps), action_scale, action_bias, act_dim=act_dim
    )
    greedy = jax.block_until_ready(greedy)
    assert actions.shape == (batch, act_dim)
    assert jnp.allclose(actions, ref, atol=1e-5, rtol=1e-5)
    assert jnp.allclose(greedy, ref_greedy, atol=1e-5, rtol=1e-5)

    # --- bf16 matmul operands (v6e/v7x MXU-native), f32 accumulate -----------
    packed_bf16 = prepare_params(params, compute_dtype=jnp.bfloat16)
    actions_bf16 = sac_player_forward(
        obs, packed_bf16, eps, action_scale, action_bias,
        act_dim=act_dim, compute_dtype=jnp.bfloat16,
    )
    actions_bf16 = jax.block_until_ready(actions_bf16)
    assert jnp.allclose(actions_bf16, ref, atol=3e-2, rtol=3e-2)

    print("KERNEL_OK")
</pallas_src>

<mosaic_0001>
module attributes {stable_mosaic.version = 11 : i64} {
  func.func @_sac_player_kernel(%arg0: i32, %arg1: memref<8x128xf32, #tpu.memory_space<vmem>>, %arg2: memref<128x128xf32, #tpu.memory_space<vmem>>, %arg3: memref<1x128xf32, #tpu.memory_space<vmem>>, %arg4: memref<128x128xf32, #tpu.memory_space<vmem>>, %arg5: memref<1x128xf32, #tpu.memory_space<vmem>>, %arg6: memref<128x256xf32, #tpu.memory_space<vmem>>, %arg7: memref<1x256xf32, #tpu.memory_space<vmem>>, %arg8: memref<8x128xf32, #tpu.memory_space<vmem>>, %arg9: memref<1x1xf32, #tpu.memory_space<smem>>, %arg10: memref<1x1xf32, #tpu.memory_space<smem>>, %arg11: memref<8x128xf32, #tpu.memory_space<vmem>>) attributes {dimension_semantics = [#tpu.dimension_semantics<parallel>], iteration_bounds = array<i64: 1>, scalar_prefetch = 0 : i64, scratch_operands = 0 : i64, tpu.core_type = #tpu.core_type<tc>, window_params = [{transform_indices = @transform_0, window_bounds = array<i64: 8, 128>}, {pipeline_mode = #tpu.pipeline_mode<synchronous>, transform_indices = @transform_1, window_bounds = array<i64: 128, 128>}, {pipeline_mode = #tpu.pipeline_mode<synchronous>, transform_indices = @transform_2, window_bounds = array<i64: 1, 128>}, {pipeline_mode = #tpu.pipeline_mode<synchronous>, transform_indices = @transform_3, window_bounds = array<i64: 128, 128>}, {pipeline_mode = #tpu.pipeline_mode<synchronous>, transform_indices = @transform_4, window_bounds = array<i64: 1, 128>}, {pipeline_mode = #tpu.pipeline_mode<synchronous>, transform_indices = @transform_5, window_bounds = array<i64: 128, 256>}, {pipeline_mode = #tpu.pipeline_mode<synchronous>, transform_indices = @transform_6, window_bounds = array<i64: 1, 256>}, {transform_indices = @transform_7, window_bounds = array<i64: 8, 128>}, {transform_indices = @transform_8, window_bounds = array<i64: 1, 1>}, {transform_indices = @transform_9, window_bounds = array<i64: 1, 1>}, {transform_indices = @transform_10, window_bounds = array<i64: 8, 128>}]} {
    %c0 = arith.constant 0 : index
    %c0_0 = arith.constant 0 : index
    %0 = vector.load %arg1[%c0, %c0_0] : memref<8x128xf32, #tpu.memory_space<vmem>>, vector<8x128xf32>
    %c0_1 = arith.constant 0 : index
    %c0_2 = arith.constant 0 : index
    %1 = vector.load %arg2[%c0_1, %c0_2] : memref<128x128xf32, #tpu.memory_space<vmem>>, vector<128x128xf32>
    %cst = arith.constant dense<0.000000e+00> : vector<8x128xf32>
    %2 = tpu.matmul %0, %1, %cst {dimension_numbers = #tpu.dot_dimension_numbers<[1], [0], [0], [1], [0, 0, 1, 1], [], []>} : vector<8x128xf32>, vector<128x128xf32>, vector<8x128xf32> -> vector<8x128xf32>
    %c0_3 = arith.constant 0 : index
    %c0_4 = arith.constant 0 : index
    %3 = vector.load %arg3[%c0_3, %c0_4] : memref<1x128xf32, #tpu.memory_space<vmem>>, vector<1x128xf32>
    %4 = vector.broadcast %3 : vector<1x128xf32> to vector<8x128xf32>
    %5 = arith.addf %2, %4 : vector<8x128xf32>
    %cst_5 = arith.constant 0.000000e+00 : f32
    %6 = vector.broadcast %cst_5 : f32 to vector<8x128xf32>
    %7 = arith.maximumf %5, %6 : vector<8x128xf32>
    %c0_6 = arith.constant 0 : index
    %c0_7 = arith.constant 0 : index
    %8 = vector.load %arg4[%c0_6, %c0_7] : memref<128x128xf32, #tpu.memory_space<vmem>>, vector<128x128xf32>
    %cst_8 = arith.constant dense<0.000000e+00> : vector<8x128xf32>
    %9 = tpu.matmul %7, %8, %cst_8 {dimension_numbers = #tpu.dot_dimension_numbers<[1], [0], [0], [1], [0, 0, 1, 1], [], []>} : vector<8x128xf32>, vector<128x128xf32>, vector<8x128xf32> -> vector<8x128xf32>
    %c0_9 = arith.constant 0 : index
    %c0_10 = arith.constant 0 : index
    %10 = vector.load %arg5[%c0_9, %c0_10] : memref<1x128xf32, #tpu.memory_space<vmem>>, vector<1x128xf32>
    %11 = vector.broadcast %10 : vector<1x128xf32> to vector<8x128xf32>
    %12 = arith.addf %9, %11 : vector<8x128xf32>
    %cst_11 = arith.constant 0.000000e+00 : f32
    %13 = vector.broadcast %cst_11 : f32 to vector<8x128xf32>
    %14 = arith.maximumf %12, %13 : vector<8x128xf32>
    %c0_12 = arith.constant 0 : index
    %c0_13 = arith.constant 0 : index
    %15 = vector.load %arg6[%c0_12, %c0_13] : memref<128x256xf32, #tpu.memory_space<vmem>>, vector<128x256xf32>
    %cst_14 = arith.constant dense<0.000000e+00> : vector<8x256xf32>
    %16 = tpu.matmul %14, %15, %cst_14 {dimension_numbers = #tpu.dot_dimension_numbers<[1], [0], [0], [1], [0, 0, 1, 1], [], []>} : vector<8x128xf32>, vector<128x256xf32>, vector<8x256xf32> -> vector<8x256xf32>
    %c0_15 = arith.constant 0 : index
    %c0_16 = arith.constant 0 : index
    %17 = vector.load %arg7[%c0_15, %c0_16] : memref<1x256xf32, #tpu.memory_space<vmem>>, vector<1x256xf32>
    %18 = vector.broadcast %17 : vector<1x256xf32> to vector<8x256xf32>
    %19 = arith.addf %16, %18 : vector<8x256xf32>
    %20 = vector.extract_strided_slice %19 {offsets = [0, 0], sizes = [8, 128], strides = [1, 1]} : vector<8x256xf32> to vector<8x128xf32>
    %21 = vector.extract_strided_slice %19 {offsets = [0, 128], sizes = [8, 128], strides = [1, 1]} : vector<8x256xf32> to vector<8x128xf32>
    %cst_17 = arith.constant -5.000000e+00 : f32
    %cst_18 = arith.constant 2.000000e+00 : f32
    %22 = vector.broadcast %cst_17 : f32 to vector<8x128xf32>
    %23 = arith.maximumf %22, %21 : vector<8x128xf32>
    %24 = vector.broadcast %cst_18 : f32 to vector<8x128xf32>
    %25 = arith.minimumf %24, %23 : vector<8x128xf32>
    %26 = math.exp %25 : vector<8x128xf32>
    %c0_19 = arith.constant 0 : index
    %c0_20 = arith.constant 0 : index
    %27 = vector.load %arg8[%c0_19, %c0_20] : memref<8x128xf32, #tpu.memory_space<vmem>>, vector<8x128xf32>
    %28 = arith.mulf %26, %27 : vector<8x128xf32>
    %29 = arith.addf %20, %28 : vector<8x128xf32>
    %30 = math.tanh %29 : vector<8x128xf32>
    %c0_21 = arith.constant 0 : index
    %c0_22 = arith.constant 0 : index
    %31 = memref.load %arg9[%c0_21, %c0_22] : memref<1x1xf32, #tpu.memory_space<smem>>
    %32 = vector.broadcast %31 : f32 to vector<8x128xf32>
    %33 = arith.mulf %30, %32 : vector<8x128xf32>
    %c0_23 = arith.constant 0 : index
    %c0_24 = arith.constant 0 : index
    %34 = memref.load %arg10[%c0_23, %c0_24] : memref<1x1xf32, #tpu.memory_space<smem>>
    %35 = vector.broadcast %34 : f32 to vector<8x128xf32>
    %36 = arith.addf %33, %35 : vector<8x128xf32>
    %c0_25 = arith.constant 0 : index
    %c0_26 = arith.constant 0 : index
    %37 = vector.load %arg11[%c0_25, %c0_26] : memref<8x128xf32, #tpu.memory_space<vmem>>, vector<8x128xf32>
    tpu.vector_store %arg11[%c0_25, %c0_26], %36 {strides = array<i32>} : memref<8x128xf32, #tpu.memory_space<vmem>>, vector<8x128xf32>,
    return
  }
  func.func @transform_0(%arg0: i32) -> (i32, i32) {
    %c0_i32 = arith.constant 0 : i32
    %c0_i32_0 = arith.constant 0 : i32
    return %arg0, %c0_i32 : i32, i32
  }
  func.func @transform_1(%arg0: i32) -> (i32, i32) {
    %c0_i32 = arith.constant 0 : i32
    %c0_i32_0 = arith.constant 0 : i32
    %c0_i32_1 = arith.constant 0 : i32
    return %c0_i32, %c0_i32_0 : i32, i32
  }
  func.func @transform_2(%arg0: i32) -> (i32, i32) {
    %c0_i32 = arith.constant 0 : i32
    %c0_i32_0 = arith.constant 0 : i32
    %c0_i32_1 = arith.constant 0 : i32
    return %c0_i32, %c0_i32_0 : i32, i32
  }
  func.func @transform_3(%arg0: i32) -> (i32, i32) {
    %c0_i32 = arith.constant 0 : i32
    %c0_i32_0 = arith.constant 0 : i32
    %c0_i32_1 = arith.constant 0 : i32
    return %c0_i32, %c0_i32_0 : i32, i32
  }
  func.func @transform_4(%arg0: i32) -> (i32, i32) {
    %c0_i32 = arith.constant 0 : i32
    %c0_i32_0 = arith.constant 0 : i32
    %c0_i32_1 = arith.constant 0 : i32
    return %c0_i32, %c0_i32_0 : i32, i32
  }
  func.func @transform_5(%arg0: i32) -> (i32, i32) {
    %c0_i32 = arith.constant 0 : i32
    %c0_i32_0 = arith.constant 0 : i32
    %c0_i32_1 = arith.constant 0 : i32
    return %c0_i32, %c0_i32_0 : i32, i32
  }
  func.func @transform_6(%arg0: i32) -> (i32, i32) {
    %c0_i32 = arith.constant 0 : i32
    %c0_i32_0 = arith.constant 0 : i32
    %c0_i32_1 = arith.constant 0 : i32
    return %c0_i32, %c0_i32_0 : i32, i32
  }
  func.func @transform_7(%arg0: i32) -> (i32, i32) {
    %c0_i32 = arith.constant 0 : i32
    %c0_i32_0 = arith.constant 0 : i32
    return %arg0, %c0_i32 : i32, i32
  }
  func.func @transform_8(%arg0: i32) -> (i32, i32) {
    %c0_i32 = arith.constant 0 : i32
    %c0_i32_0 = arith.constant 0 : i32
    %c0_i32_1 = arith.constant 0 : i32
    return %c0_i32, %c0_i32_0 : i32, i32
  }
  func.func @transform_9(%arg0: i32) -> (i32, i32) {
    %c0_i32 = arith.constant 0 : i32
    %c0_i32_0 = arith.constant 0 : i32
    %c0_i32_1 = arith.constant 0 : i32
    return %c0_i32, %c0_i32_0 : i32, i32
  }
  func.func @transform_10(%arg0: i32) -> (i32, i32) {
    %c0_i32 = arith.constant 0 : i32
    %c0_i32_0 = arith.constant 0 : i32
    return %arg0, %c0_i32 : i32, i32
  }
}

</mosaic_0001>

<llo_original>
// kernel: sac_player_forward.1
$region0: #{sac_player_forward.1}
  #allocation0 [shape = 'u32[]', space=smem, size = 0x4, offset = 0x4, fixed_abs, tag = 'smem constant byte address 0x4 - core index']
  #allocation1 [shape = 'u32[72,128]{1,0:T(1,128)}', space=vmem, size = 0x9000, scoped, tag = 'internal scratch']
  #allocation2 [shape = 'f32[1,1]{1,0:T(1,128)S(6)}', space=smem, size = 0x200, scoped, tag = 'scoped memory for sac_player_forward.1']
  #allocation3 [shape = 'f32[1,1]{1,0:T(1,128)S(6)}', space=smem, size = 0x200, scoped, tag = 'scoped memory for sac_player_forward.1']
  %s0 = inlined_call_operand.vmem [shape: f32[8,128], index: 0, kind: input, shape index: {}]
  %s1 = inlined_call_operand.hbm [shape: f32[128,128], index: 1, kind: input, shape index: {}]
  %s2 = inlined_call_operand.vmem [shape: f32[1,128], index: 2, kind: input, shape index: {}]
  %s3 = inlined_call_operand.hbm [shape: f32[128,128], index: 3, kind: input, shape index: {}]
  %s4 = inlined_call_operand.vmem [shape: f32[1,128], index: 4, kind: input, shape index: {}]
  %s5 = inlined_call_operand.hbm [shape: f32[128,256], index: 5, kind: input, shape index: {}]
  %s6 = inlined_call_operand.vmem [shape: f32[1,256], index: 6, kind: input, shape index: {}]
  %s7 = inlined_call_operand.vmem [shape: f32[8,128], index: 7, kind: input, shape index: {}]
  %s8 = inlined_call_operand.<no memory space> [shape: f32[1,1], index: 8, kind: input, shape index: {}]
  %s9 = inlined_call_operand.<no memory space> [shape: f32[1,1], index: 9, kind: input, shape index: {}]
  %s10 = inlined_call_operand.vmem [shape: f32[8,128], index: 10, kind: output, shape index: {}]
  %s11 = sld [smem:[#allocation0]]
  $region62: #{sac_player_forward.1} parent=0
    _
  %s13 = ssub.s32 1, %s11
  %s14 = scalar_select 0, %s13, %s11
  %15 = sst [smem:[#allocation2]] %s8
  %16 = sst [smem:[#allocation3]] %s9
  $region1: #{sac_player_forward.1} parent=0
    #allocation4 [shape = 'u8[65536]{0}', space=vmem, size = 0x10000, scoped, tag = 'input window, operand 1, single buffered']
    #allocation5 [shape = 's32[1]{0}', space=sflag, size = 0x4, scoped, tag = 'scoped memory for sac_player_forward.1']
    #allocation6 [shape = 'u8[65536]{0}', space=vmem, size = 0x10000, scoped, tag = 'input window, operand 3, single buffered']
    #allocation7 [shape = 's32[1]{0}', space=sflag, size = 0x4, scoped, tag = 'scoped memory for sac_player_forward.1']
    #allocation8 [shape = 'u8[131072]{0}', space=vmem, size = 0x20000, scoped, tag = 'input window, operand 5, single buffered']
    %17 = vsyncpa [#allocation5], 0
    %18 = vsyncpa [#allocation7], 0
    // Predicated region
    $region2: #{sac_player_forward.1} parent=1 // pred_check
      _
    $region3: #{sac_player_forward.1} parent=1 // pred_check_branch
      %20 = sbr.rel (0) target = $region5
    $region4: #{sac_player_forward.1} parent=1 // pred_region
      _
    $region5: #{sac_player_forward.1} parent=1 // pred_fallthru
      _
    // Predicated region
    $region6: #{sac_player_forward.1} parent=1 // pred_check
      _
    $region7: #{sac_player_forward.1} parent=1 // pred_check_branch
      %22 = sbr.rel (0) target = $region9
    $region8: #{sac_player_forward.1} parent=1 // pred_region
      %24 = vsyncadd [#allocation5], 0
      %s25 = sshll.u32 %s1, 4
      %s26 = int_to_ptr.hbm [resolvable:$true] %s25
      %s27 = sshll.u32 [#allocation4], 4
      %s28 = int_to_ptr.vmem [resolvable:$true] %s27
      %33 = dma.hbm_to_vmem [thread:$0]  %s26, 2048, %s28, [#allocation5], 128, 128, 8
    $region9: #{sac_player_forward.1} parent=1 // pred_fallthru
      _
    // Predicated region
    $region10: #{sac_player_forward.1} parent=1 // pred_check
      _
    $region11: #{sac_player_forward.1} parent=1 // pred_check_branch
      %35 = sbr.rel (0) target = $region13
    $region12: #{sac_player_forward.1} parent=1 // pred_region
      _
    $region13: #{sac_player_forward.1} parent=1 // pred_fallthru
      _
    // Predicated region
    $region14: #{sac_player_forward.1} parent=1 // pred_check
      _
    $region15: #{sac_player_forward.1} parent=1 // pred_check_branch
      %37 = sbr.rel (0) target = $region17
    $region16: #{sac_player_forward.1} parent=1 // pred_region
      %39 = vsyncadd [#allocation7], 0
      %s40 = sshll.u32 %s3, 4
      %s41 = int_to_ptr.hbm [resolvable:$true] %s40
      %s42 = sshll.u32 [#allocation6], 4
      %s43 = int_to_ptr.vmem [resolvable:$true] %s42
      %48 = dma.hbm_to_vmem [thread:$0]  %s41, 2048, %s43, [#allocation7], 128, 128, 8
    $region17: #{sac_player_forward.1} parent=1 // pred_fallthru
      _
    // Predicated region
    $region18: #{sac_player_forward.1} parent=1 // pred_check
      _
    $region19: #{sac_player_forward.1} parent=1 // pred_check_branch
      %50 = sbr.rel (0) target = $region21
    $region20: #{sac_player_forward.1} parent=1 // pred_region
      _
    $region21: #{sac_player_forward.1} parent=1 // pred_fallthru
      _
    // Predicated region
    $region22: #{sac_player_forward.1} parent=1 // pred_check
      _
    $region23: #{sac_player_forward.1} parent=1 // pred_check_branch
      %52 = sbr.rel (0) target = $region25
    $region24: #{sac_player_forward.1} parent=1 // pred_region
      %54 = vsyncadd [#allocation7], 0
      %s55 = sshll.u32 %s5, 4
      %s56 = int_to_ptr.hbm [resolvable:$true] %s55
      %s57 = sshll.u32 [#allocation8], 4
      %s58 = int_to_ptr.vmem [resolvable:$true] %s57
      %63 = dma.hbm_to_vmem [thread:$0]  %s56, 4096, %s58, [#allocation7], 256, 256, 16
    $region25: #{sac_player_forward.1} parent=1 // pred_fallthru
      _
    // Predicated region
    $region26: #{sac_player_forward.1} parent=1 // pred_check
      _
    $region27: #{sac_player_forward.1} parent=1 // pred_check_branch
      %65 = sbr.rel (0) target = $region29
    $region28: #{sac_player_forward.1} parent=1 // pred_region
      _
    $region29: #{sac_player_forward.1} parent=1 // pred_fallthru
      _
    // Predicated region
    $region30: #{sac_player_forward.1} parent=1 // pred_check
      _
    $region31: #{sac_player_forward.1} parent=1 // pred_check_branch
      %67 = sbr.rel (0) target = $region33
    $region32: #{sac_player_forward.1} parent=1 // pred_region
      _
    $region33: #{sac_player_forward.1} parent=1 // pred_fallthru
      _
    // Predicated region
    $region34: #{sac_player_forward.1} parent=1 // pred_check
      _
    $region35: #{sac_player_forward.1} parent=1 // pred_check_branch
      %69 = sbr.rel (0) target = $region37
    $region36: #{sac_player_forward.1} parent=1 // pred_region
      _
    $region37: #{sac_player_forward.1} parent=1 // pred_fallthru
      _
    // Predicated region
    $region38: #{sac_player_forward.1} parent=1 // pred_check
      _
    $region39: #{sac_player_forward.1} parent=1 // pred_check_branch
      %71 = sbr.rel (0) target = $region41
    $region40: #{sac_player_forward.1} parent=1 // pred_region
      _
    $region41: #{sac_player_forward.1} parent=1 // pred_fallthru
      _
    // Predicated region
    $region42: #{sac_player_forward.1} parent=1 // pred_check
      _
    $region43: #{sac_player_forward.1} parent=1 // pred_check_branch
      %73 = sbr.rel (0) target = $region45
    $region44: #{sac_player_forward.1} parent=1 // pred_region
      %75 = dma.done [#allocation5], 2048
    $region45: #{sac_player_forward.1} parent=1 // pred_fallthru
      _
    // Predicated region
    $region46: #{sac_player_forward.1} parent=1 // pred_check
      _
    $region47: #{sac_player_forward.1} parent=1 // pred_check_branch
      %77 = sbr.rel (0) target = $region49
    $region48: #{sac_player_forward.1} parent=1 // pred_region
      %79 = dma.done [#allocation7], 2048
    $region49: #{sac_player_forward.1} parent=1 // pred_fallthru
      _
    // Predicated region
    $region50: #{sac_player_forward.1} parent=1 // pred_check
      _
    $region51: #{sac_player_forward.1} parent=1 // pred_check_branch
      %81 = sbr.rel (0) target = $region53
    $region52: #{sac_player_forward.1} parent=1 // pred_region
      %83 = dma.done [#allocation7], 4096
    $region53: #{sac_player_forward.1} parent=1 // pred_fallthru
      _
    %v84 = vld [vmem:[%s0] sm:$0xff]
    %v85 = vld [vmem:[#allocation4] sm:$0xff]
    %v86 = vld [vmem:[#allocation4 + $0x8] sm:$0xff]
    %v87 = vld [vmem:[#allocation4 + $0x10] sm:$0xff]
    %v88 = vld [vmem:[#allocation4 + $0x18] sm:$0xff]
    %v89 = vld [vmem:[#allocation4 + $0x20] sm:$0xff]
    %v90 = vld [vmem:[#allocation4 + $0x28] sm:$0xff]
    %v91 = vld [vmem:[#allocation4 + $0x30] sm:$0xff]
    %v92 = vld [vmem:[#allocation4 + $0x38] sm:$0xff]
    %v93 = vld [vmem:[#allocation4 + $0x40] sm:$0xff]
    %v94 = vld [vmem:[#allocation4 + $0x48] sm:$0xff]
    %v95 = vld [vmem:[#allocation4 + $0x50] sm:$0xff]
    %v96 = vld [vmem:[#allocation4 + $0x58] sm:$0xff]
    %v97 = vld [vmem:[#allocation4 + $0x60] sm:$0xff]
    %v98 = vld [vmem:[#allocation4 + $0x68] sm:$0xff]
    %v99 = vld [vmem:[#allocation4 + $0x70] sm:$0xff]
    %v100 = vld [vmem:[#allocation4 + $0x78] sm:$0xff]
    %v101 = vld [vmem:[%s2] sm:$0x1]
    %v103 = vperm.slane %v101, 0
    %105 = vmatpush.msra.mxu0 %v100
    %106 = vmatpush.msra.mxu0 %v99
    %107 = vmatpush.msra.mxu0 %v98
    %108 = vmatpush.msra.mxu0 %v97
    %109 = vmatpush.msra.mxu0 %v96
    %110 = vmatpush.msra.mxu0 %v95
    %111 = vmatpush.msra.mxu0 %v94
    %112 = vmatpush.msra.mxu0 %v93
    %113 = vmatpush.msra.mxu0 %v92
    %114 = vmatpush.msra.mxu0 %v91
    %115 = vmatpush.msra.mxu0 %v90
    %116 = vmatpush.msra.mxu0 %v89
    %117 = vmatpush.msra.mxu0 %v88
    %118 = vmatpush.msra.mxu0 %v87
    %119 = vmatpush.msra.mxu0 %v86
    %120 = vmatpush.msra.mxu0 %v85
    %121 = vmatmul.f32.gmra.mxu0 %v84
    %v122 = vpop.f32.mrf.mxu0
    %v123 = vadd.f32 %v103, %v122
    %124 = vdwg.mxu0
    %v125 = vmax.f32 %v123, 0.0
    %v126 = vld [vmem:[#allocation6] sm:$0xff]
    %v127 = vld [vmem:[#allocation6 + $0x8] sm:$0xff]
    %v128 = vld [vmem:[#allocation6 + $0x10] sm:$0xff]
    %v129 = vld [vmem:[#allocation6 + $0x18] sm:$0xff]
    %v130 = vld [vmem:[#allocation6 + $0x20] sm:$0xff]
    %v131 = vld [vmem:[#allocation6 + $0x28] sm:$0xff]
    %v132 = vld [vmem:[#allocation6 + $0x30] sm:$0xff]
    %v133 = vld [vmem:[#allocation6 + $0x38] sm:$0xff]
    %v134 = vld [vmem:[#allocation6 + $0x40] sm:$0xff]
    %v135 = vld [vmem:[#allocation6 + $0x48] sm:$0xff]
    %v136 = vld [vmem:[#allocation6 + $0x50] sm:$0xff]
    %v137 = vld [vmem:[#allocation6 + $0x58] sm:$0xff]
    %v138 = vld [vmem:[#allocation6 + $0x60] sm:$0xff]
    %v139 = vld [vmem:[#allocation6 + $0x68] sm:$0xff]
    %v140 = vld [vmem:[#allocation6 + $0x70] sm:$0xff]
    %v141 = vld [vmem:[#allocation6 + $0x78] sm:$0xff]
    %v142 = vld [vmem:[%s4] sm:$0x1]
    %v144 = vperm.slane %v142, 0
    %146 = vmatpush.msra.mxu0 %v141
    %147 = vmatpush.msra.mxu0 %v140
    %148 = vmatpush.msra.mxu0 %v139
    %149 = vmatpush.msra.mxu0 %v138
    %150 = vmatpush.msra.mxu0 %v137
    %151 = vmatpush.msra.mxu0 %v136
    %152 = vmatpush.msra.mxu0 %v135
    %153 = vmatpush.msra.mxu0 %v134
    %154 = vmatpush.msra.mxu0 %v133
    %155 = vmatpush.msra.mxu0 %v132
    %156 = vmatpush.msra.mxu0 %v131
    %157 = vmatpush.msra.mxu0 %v130
    %158 = vmatpush.msra.mxu0 %v129
    %159 = vmatpush.msra.mxu0 %v128
    %160 = vmatpush.msra.mxu0 %v127
    %161 = vmatpush.msra.mxu0 %v126
    %162 = vmatmul.f32.gmra.mxu0 %v125
    %v163 = vpop.f32.mrf.mxu0
    %v164 = vadd.f32 %v144, %v163
    %165 = vdwg.mxu0
    %v166 = vmax.f32 %v164, 0.0
    %v167 = vld [vmem:[#allocation8] sm:$0xff]
    %v168 = vld [vmem:[#allocation8 + $0x8] sm:$0xff]
    %v169 = vld [vmem:[#allocation8 + $0x10] sm:$0xff]
    %v170 = vld [vmem:[#allocation8 + $0x18] sm:$0xff]
    %v171 = vld [vmem:[#allocation8 + $0x20] sm:$0xff]
    %v172 = vld [vmem:[#allocation8 + $0x28] sm:$0xff]
    %v173 = vld [vmem:[#allocation8 + $0x30] sm:$0xff]
    %v174 = vld [vmem:[#allocation8 + $0x38] sm:$0xff]
    %v175 = vld [vmem:[#allocation8 + $0x40] sm:$0xff]
    %v176 = vld [vmem:[#allocation8 + $0x48] sm:$0xff]
    %v177 = vld [vmem:[#allocation8 + $0x50] sm:$0xff]
    %v178 = vld [vmem:[#allocation8 + $0x58] sm:$0xff]
    %v179 = vld [vmem:[#allocation8 + $0x60] sm:$0xff]
    %v180 = vld [vmem:[#allocation8 + $0x68] sm:$0xff]
    %v181 = vld [vmem:[#allocation8 + $0x70] sm:$0xff]
    %v182 = vld [vmem:[#allocation8 + $0x78] sm:$0xff]
    %v183 = vld [vmem:[#allocation8 + $0x80] sm:$0xff]
    %v184 = vld [vmem:[#allocation8 + $0x88] sm:$0xff]
    %v185 = vld [vmem:[#allocation8 + $0x90] sm:$0xff]
    %v186 = vld [vmem:[#allocation8 + $0x98] sm:$0xff]
    %v187 = vld [vmem:[#allocation8 + $0xa0] sm:$0xff]
    %v188 = vld [vmem:[#allocation8 + $0xa8] sm:$0xff]
    %v189 = vld [vmem:[#allocation8 + $0xb0] sm:$0xff]
    %v190 = vld [vmem:[#allocation8 + $0xb8] sm:$0xff]
    %v191 = vld [vmem:[#allocation8 + $0xc0] sm:$0xff]
    %v192 = vld [vmem:[#allocation8 + $0xc8] sm:$0xff]
    %v193 = vld [vmem:[#allocation8 + $0xd0] sm:$0xff]
    %v194 = vld [vmem:[#allocation8 + $0xd8] sm:$0xff]
    %v195 = vld [vmem:[#allocation8 + $0xe0] sm:$0xff]
    %v196 = vld [vmem:[#allocation8 + $0xe8] sm:$0xff]
    %v197 = vld [vmem:[#allocation8 + $0xf0] sm:$0xff]
    %v198 = vld [vmem:[#allocation8 + $0xf8] sm:$0xff]
    %v199 = vld [vmem:[%s6] sm:$0x3]
    %v201 = vperm.slane %v199, 0
    %v202 = vperm.slane %v199, 1
    %205 = vmatpush.msra.mxu0 %v197
    %206 = vmatpush.msra.mxu0 %v195
    %207 = vmatpush.msra.mxu0 %v193
    %208 = vmatpush.msra.mxu0 %v191
    %209 = vmatpush.msra.mxu0 %v189
    %210 = vmatpush.msra.mxu0 %v187
    %211 = vmatpush.msra.mxu0 %v185
    %212 = vmatpush.msra.mxu0 %v183
    %213 = vmatpush.msra.mxu0 %v181
    %214 = vmatpush.msra.mxu0 %v179
    %215 = vmatpush.msra.mxu0 %v177
    %216 = vmatpush.msra.mxu0 %v175
    %217 = vmatpush.msra.mxu0 %v173
    %218 = vmatpush.msra.mxu0 %v171
    %219 = vmatpush.msra.mxu0 %v169
    %220 = vmatpush.msra.mxu0 %v167
    %221 = vmatmul.f32.gmra.mxu0 %v166
    %v222 = vpop.f32.mrf.mxu0
    %v223 = vadd.f32 %v201, %v222
    %224 = vdwg.mxu0
    %225 = vmatpush.msra.mxu0 %v198
    %226 = vmatpush.msra.mxu0 %v196
    %227 = vmatpush.msra.mxu0 %v194
    %228 = vmatpush.msra.mxu0 %v192
    %229 = vmatpush.msra.mxu0 %v190
    %230 = vmatpush.msra.mxu0 %v188
    %231 = vmatpush.msra.mxu0 %v186
    %232 = vmatpush.msra.mxu0 %v184
    %233 = vmatpush.msra.mxu0 %v182
    %234 = vmatpush.msra.mxu0 %v180
    %235 = vmatpush.msra.mxu0 %v178
    %236 = vmatpush.msra.mxu0 %v176
    %237 = vmatpush.msra.mxu0 %v174
    %238 = vmatpush.msra.mxu0 %v172
    %239 = vmatpush.msra.mxu0 %v170
    %240 = vmatpush.msra.mxu0 %v168
    %241 = vmatmul.f32.gmra.mxu0 %v166
    %v242 = vpop.f32.mrf.mxu0
    %v243 = vadd.f32 %v202, %v242
    %244 = vdwg.mxu0
    %v245 = vmax.f32 %v243, -5.0
    %v246 = vmin.f32 %v245, 2.0
    %v247 = vmul.f32 %v246, 1.442695
    %v248 = vpow.pop %v247
    %v249 = vld [vmem:[%s7] sm:$0xff]
    %v250 = vmul.f32 %v248, %v249
    %v251 = vadd.f32 %v223, %v250
    %v252 = vtanh.pop %v251
    %s253 = sld [smem:[#allocation2]]
    %v254 = vstv %s253
    %v255 = vmul.f32 %v252, %v254
    %s256 = sld [smem:[#allocation3]]
    %v257 = vstv %s256
    %v258 = vadd.f32 %v255, %v257
    %259 = vst [vmem:[%s10] sm:$0xff] %v258
    // Predicated region
    $region54: #{sac_player_forward.1} parent=1 // pred_check
      _
    $region55: #{sac_player_forward.1} parent=1 // pred_check_branch
      %261 = sbr.rel (0) target = $region57
    $region56: #{sac_player_forward.1} parent=1 // pred_region
      _
    $region57: #{sac_player_forward.1} parent=1 // pred_fallthru
      _
    // Predicated region
    $region58: #{sac_player_forward.1} parent=1 // pred_check
      _
    $region59: #{sac_player_forward.1} parent=1 // pred_check_branch
      %263 = sbr.rel (0) target = $region61
    $region60: #{sac_player_forward.1} parent=1 // pred_region
      _
    $region61: #{sac_player_forward.1} parent=1 // pred_fallthru
      _
    %264 = vsyncpa [#allocation5], 1
    %265 = vsyncpa [#allocation7], 1

</llo_original>
